<compile_context>
chip_gen: v7x
topology: tpu7x:2x2x1
jax: 0.10.0
libtpu: 0.0.40
codegen_flags: <defaults>
</compile_context>

<pallas_src>
import functools
import math

import jax
import jax.numpy as jnp
from jax.experimental import pallas as pl
from jax.experimental.pallas import tpu as pltpu


def _round_up(a: int, b: int) -> int:
    return ((a + b - 1) // b) * b


def _round_down(a: int, b: int) -> int:
    return (a // b) * b


# ---------------------------------------------------------------------------
# Kernels
# ---------------------------------------------------------------------------

def _self_qk_h1_kernel(q_ref, o_ref, *, scale, chunk):
    """num_heads == 1 fast path.

    q_ref block : (tn, d)  -- tokens on sublanes, features on lanes
    o_ref block : (1, tn)  -- lane-dense row of scaled per-token squared norms

    qk[t, 0, 0] == |q_t|^2.  Per chunk: square on the VPU, then one MXU
    transposed contraction (ones(8,d) @ sq(chunk,d)^T) reduces over d and
    emits tokens-on-lanes directly (no XLU reduce, no sublane->lane relayout).
    """
    tn, d = q_ref.shape
    w = jnp.ones((8, d), dtype=q_ref.dtype)     # contract-over-d "weights"
    dn = (((1,), (1,)), ((), ()))                # A @ B^T (flash q@k^T pattern)
    for start in range(0, tn, chunk):            # static, fully unrolled
        q = q_ref[start:start + chunk, :]        # (chunk, d), native dtype
        r = jax.lax.dot_general(w, q * q, dn,
                                preferred_element_type=jnp.float32)  # (8, chunk)
        o_ref[:, start:start + chunk] = (r[0:1, :] * scale).astype(o_ref.dtype)


def _self_qk_hn_kernel(q_ref, o_ref, *, scale, h, d, chunk):
    """General num_heads > 1 path.

    q_ref block : (tn, h*d)  -- lane-dense; head i lives in lanes [i*d, (i+1)*d)
    o_ref block : (h*h, tn)  -- lane-dense; row i*h + j holds qk[:, i, j]
    """
    tn = q_ref.shape[0]
    w = jnp.ones((8, d), dtype=q_ref.dtype)
    dn = (((1,), (1,)), ((), ()))
    for start in range(0, tn, chunk):            # static, fully unrolled
        for i in range(h):
            qi = q_ref[start:start + chunk, i * d:(i + 1) * d]      # (chunk, d)
            for j in range(i, h):
                qj = q_ref[start:start + chunk, j * d:(j + 1) * d]  # (chunk, d)
                r = jax.lax.dot_general(w, qi * qj, dn,
                                        preferred_element_type=jnp.float32)
                val = (r[0:1, :] * scale).astype(o_ref.dtype)       # (1, chunk)
                o_ref[i * h + j:i * h + j + 1, start:start + chunk] = val
                if j != i:                       # qk is symmetric (q == k)
                    o_ref[j * h + i:j * h + i + 1, start:start + chunk] = val


# ---------------------------------------------------------------------------
# Wrapper (equivalent of Model(num_heads).forward(x))
# ---------------------------------------------------------------------------

def scaled_self_qk(x, num_heads=1, tn=8192):
    d = int(x.shape[-1])
    h = int(num_heads)
    n = int(x.size) // (h * d)
    scale = 1.0 / math.cbrt(float(d))
    itemsize = jnp.dtype(x.dtype).itemsize
    # Keep 2 double-buffered (lane-padded) input tiles + output buffers well
    # under the default scoped-VMEM limit on every generation (16 MiB on v5e).
    vmem_budget = 12 << 20

    if h == 1:
        # --- fast path: output is the scaled squared norm of each token ----
        q2 = x.reshape(n, d)                     # free metadata reshape
        n128 = _round_up(n, 128)
        d_pad = _round_up(d, 128)                # lane padding of a (tn, d) tile

        tn_eff = min(_round_up(tn, 128), n128)
        max_tn = max(128, _round_down(vmem_budget // (2 * d_pad * itemsize), 128))
        tn_eff = min(tn_eff, max_tn)
        # v7x: keep >= 2 grid steps so the "parallel" axis can use both TCs.
        if n128 >= 256:
            tn_eff = min(tn_eff, max(128, _round_down(n128 // 2, 128)))

        n_pad = _round_up(n, tn_eff)
        if n_pad != n:
            q2 = jnp.pad(q2, ((0, n_pad - n), (0, 0)))
        g = n_pad // tn_eff

        chunk = 128                              # sub-chunk bounds vreg live ranges
        for c in (512, 256):
            if tn_eff % c == 0:
                chunk = c
                break

        kernel = functools.partial(_self_qk_h1_kernel, scale=scale, chunk=chunk)
        out = pl.pallas_call(
            kernel,
            out_shape=jax.ShapeDtypeStruct((1, n_pad), x.dtype),
            grid=(g,),
            in_specs=[pl.BlockSpec((tn_eff, d), lambda i: (i, 0))],
            out_specs=pl.BlockSpec((1, tn_eff), lambda i: (0, i)),
            compiler_params=pltpu.CompilerParams(
                dimension_semantics=("parallel",)),
            cost_estimate=pl.CostEstimate(
                flops=n_pad * d + 2 * 8 * n_pad * d,
                transcendentals=0,
                bytes_accessed=itemsize * (n_pad * d + n_pad)),
        )(q2)
        # (1, n_pad) lane-dense slab -> (N, 1, 1); reshapes/slice in plain JAX.
        return out.reshape(n_pad)[:n].reshape(n, 1, 1)

    # --- general H > 1 path (module constructor allows it) -----------------
    q2 = x.reshape(n, h * d)                     # lane-dense, no (tn,h,d) padding
    n128 = _round_up(n, 128)
    hd_pad = _round_up(h * d, 128)
    hh_pad = _round_up(h * h, 8)
    per_tok = 2 * hd_pad * itemsize + 2 * hh_pad * itemsize   # in + out buffers
    max_tn = max(128, _round_down(vmem_budget // per_tok, 128))
    tn_eff = min(_round_up(tn, 128), n128, max_tn, 2048)
    if n128 >= 256:
        tn_eff = min(tn_eff, max(128, _round_down(n128 // 2, 128)))
    n_pad = _round_up(n, tn_eff)
    if n_pad != n:
        q2 = jnp.pad(q2, ((0, n_pad - n), (0, 0)))
    g = n_pad // tn_eff

    chunk = 128
    for c in (512, 256):
        if tn_eff % c == 0:
            chunk = c
            break

    kernel = functools.partial(_self_qk_hn_kernel,
                               scale=scale, h=h, d=d, chunk=chunk)
    out = pl.pallas_call(
        kernel,
        out_shape=jax.ShapeDtypeStruct((h * h, n_pad), x.dtype),
        grid=(g,),
        in_specs=[pl.BlockSpec((tn_eff, h * d), lambda i: (i, 0))],
        out_specs=pl.BlockSpec((h * h, tn_eff), lambda i: (0, i)),
        compiler_params=pltpu.CompilerParams(
            dimension_semantics=("parallel",)),
        cost_estimate=pl.CostEstimate(
            flops=2 * n_pad * h * h * d,
            transcendentals=0,
            bytes_accessed=itemsize * (n_pad * h * d + n_pad * h * h)),
    )(q2)
    # (h*h, n_pad) tokens-on-lanes -> (n, h, h); small XLA transpose outside.
    return out[:, :n].T.reshape(n, h, h)


# ---------------------------------------------------------------------------
# Self-test
# ---------------------------------------------------------------------------

if __name__ == "__main__":
    def reference(x, num_heads):
        d = x.shape[-1]
        q = x.reshape(-1, num_heads, d)
        qk = jnp.einsum("nhd,ngd->nhg", q, q,
                        precision=jax.lax.Precision.HIGHEST)
        return qk / math.cbrt(float(d))

    def check(x, num_heads, **kw):
        out = jax.block_until_ready(scaled_self_qk(x, num_heads=num_heads, **kw))
        ref = reference(x, num_heads)
        assert out.shape == ref.shape, (out.shape, ref.shape)
        # Tolerance covers the MXU's default-precision (bf16-pass) rounding of
        # the f32 products; values are O(1)-O(10) for d = 32.
        assert jnp.allclose(out, ref, rtol=5e-3, atol=5e-2), \
            float(jnp.max(jnp.abs(out - ref)))

    key = jax.random.PRNGKey(0)
    k1, k2, k3, k4 = jax.random.split(key, 4)

    # Case 1: tiny shape consistent with the module (batch=2, seq=8, hidden=32).
    check(jax.random.normal(k1, (2, 8, 32), dtype=jnp.float32), 1)

    # Case 2: forced small tile -> multi-step grid (pipelining + parallel axis).
    check(jax.random.normal(k2, (4, 128, 32), dtype=jnp.float32), 1, tn=128)

    # Case 3: default tiling path (2 tiles, multi-chunk inner loop).
    check(jax.random.normal(k3, (8, 512, 32), dtype=jnp.float32), 1)

    # Case 4: num_heads > 1 side path (lane-dense (h*h, tn) output).
    check(jax.random.normal(k4, (2, 8, 32), dtype=jnp.float32), 4)

    print("KERNEL_OK")
</pallas_src>

<mosaic_0001>
module attributes {stable_mosaic.version = 11 : i64} {
  func.func @_self_qk_h1_kernel(%arg0: i32, %arg1: memref<128x32xf32, #tpu.memory_space<vmem>>, %arg2: memref<1x128xf32, #tpu.memory_space<vmem>>) attributes {dimension_semantics = [#tpu.dimension_semantics<parallel>], iteration_bounds = array<i64: 1>, scalar_prefetch = 0 : i64, scratch_operands = 0 : i64, tpu.core_type = #tpu.core_type<tc>, window_params = [{transform_indices = @transform_0, window_bounds = array<i64: 128, 32>}, {transform_indices = @transform_1, window_bounds = array<i64: 1, 128>}]} {
    %cst = arith.constant 1.000000e+00 : f32
    %0 = vector.broadcast %cst : f32 to vector<8x32xf32>
    %c0 = arith.constant 0 : index
    %c0_0 = arith.constant 0 : index
    %1 = vector.load %arg1[%c0, %c0_0] : memref<128x32xf32, #tpu.memory_space<vmem>>, vector<128x32xf32>
    %2 = arith.mulf %1, %1 : vector<128x32xf32>
    %cst_1 = arith.constant dense<0.000000e+00> : vector<8x128xf32>
    %3 = tpu.matmul %0, %2, %cst_1 {dimension_numbers = #tpu.dot_dimension_numbers<[1], [1], [0], [0], [0, 0, 1, 0], [], []>} : vector<8x32xf32>, vector<128x32xf32>, vector<8x128xf32> -> vector<8x128xf32>
    %4 = vector.extract_strided_slice %3 {offsets = [0, 0], sizes = [1, 128], strides = [1, 1]} : vector<8x128xf32> to vector<1x128xf32>
    %cst_2 = arith.constant 0.314980268 : f32
    %5 = vector.broadcast %cst_2 : f32 to vector<1x128xf32>
    %6 = arith.mulf %4, %5 : vector<1x128xf32>
    %c0_3 = arith.constant 0 : index
    %c0_4 = arith.constant 0 : index
    %7 = vector.load %arg2[%c0_3, %c0_4] : memref<1x128xf32, #tpu.memory_space<vmem>>, vector<1x128xf32>
    tpu.vector_store %arg2[%c0_3, %c0_4], %6 {strides = array<i32>} : memref<1x128xf32, #tpu.memory_space<vmem>>, vector<1x128xf32>,
    return
  }
  func.func @transform_0(%arg0: i32) -> (i32, i32) {
    %c0_i32 = arith.constant 0 : i32
    %c0_i32_0 = arith.constant 0 : i32
    return %arg0, %c0_i32 : i32, i32
  }
  func.func @transform_1(%arg0: i32) -> (i32, i32) {
    %c0_i32 = arith.constant 0 : i32
    %c0_i32_0 = arith.constant 0 : i32
    return %c0_i32, %arg0 : i32, i32
  }
}

</mosaic_0001>

<llo_original>
// kernel: tpu_custom_call.1
$region0: #{tpu_custom_call.1}
  #allocation0 [shape = 'u32[]', space=smem, size = 0x4, offset = 0x4, fixed_abs, tag = 'smem constant byte address 0x4 - core index']
  #allocation1 [shape = 'u32[144,128]{1,0:T(1,128)}', space=vmem, size = 0x12000, scoped, tag = 'internal scratch']
  %s0 = inlined_call_operand.vmem [shape: f32[128,32], index: 0, kind: input, shape index: {}]
  %s1 = inlined_call_operand.hbm [shape: f32[1,128], index: 1, kind: output, shape index: {}]
  %s2 = sld [smem:[#allocation0]]
  $region14: #{tpu_custom_call.1} parent=0
    _
  %s4 = ssub.s32 1, %s2
  %s5 = scalar_select 0, %s4, %s2
  $region1: #{tpu_custom_call.1} parent=0
    #allocation2 [shape = 'u8[512]{0}', space=vmem, size = 0x400, scoped, tag = 'output window, operand 0, single buffered']
    #allocation3 [shape = 's32[1]{0}', space=sflag, size = 0x4, scoped, tag = 'scoped memory for tpu_custom_call.1']
    %6 = vsyncpa [#allocation3], 0
    // Predicated region
    $region2: #{tpu_custom_call.1} parent=1 // pred_check
      _
    $region3: #{tpu_custom_call.1} parent=1 // pred_check_branch
      %8 = sbr.rel (0) target = $region5
    $region4: #{tpu_custom_call.1} parent=1 // pred_region
      _
    $region5: #{tpu_custom_call.1} parent=1 // pred_fallthru
      _
    %v9 = vld [vmem:[%s0] sm:$0xff]
    %v10 = vld [vmem:[%s0 + $0x8] sm:$0xff]
    %v11 = vld [vmem:[%s0 + $0x10] sm:$0xff]
    %v12 = vld [vmem:[%s0 + $0x18] sm:$0xff]
    %v13 = vld [vmem:[%s0 + $0x20] sm:$0xff]
    %v14 = vld [vmem:[%s0 + $0x28] sm:$0xff]
    %v15 = vld [vmem:[%s0 + $0x30] sm:$0xff]
    %v16 = vld [vmem:[%s0 + $0x38] sm:$0xff]
    %v17 = vld [vmem:[%s0 + $0x40] sm:$0xff]
    %v18 = vld [vmem:[%s0 + $0x48] sm:$0xff]
    %v19 = vld [vmem:[%s0 + $0x50] sm:$0xff]
    %v20 = vld [vmem:[%s0 + $0x58] sm:$0xff]
    %v21 = vld [vmem:[%s0 + $0x60] sm:$0xff]
    %v22 = vld [vmem:[%s0 + $0x68] sm:$0xff]
    %v23 = vld [vmem:[%s0 + $0x70] sm:$0xff]
    %v24 = vld [vmem:[%s0 + $0x78] sm:$0xff]
    %v25 = vmul.f32 %v9, %v9
    %v26 = vmul.f32 %v10, %v10
    %v27 = vmul.f32 %v11, %v11
    %v28 = vmul.f32 %v12, %v12
    %v29 = vmul.f32 %v13, %v13
    %v30 = vmul.f32 %v14, %v14
    %v31 = vmul.f32 %v15, %v15
    %v32 = vmul.f32 %v16, %v16
    %v33 = vmul.f32 %v17, %v17
    %v34 = vmul.f32 %v18, %v18
    %v35 = vmul.f32 %v19, %v19
    %v36 = vmul.f32 %v20, %v20
    %v37 = vmul.f32 %v21, %v21
    %v38 = vmul.f32 %v22, %v22
    %v39 = vmul.f32 %v23, %v23
    %v40 = vmul.f32 %v24, %v24
    %vm41 = vcmask 261120
    %v43 = vsel %vm41, 1.0, 0
    %v46 = vsel %vm41, %v25, 0
    %v49 = vsel %vm41, %v26, 0
    %v52 = vsel %vm41, %v27, 0
    %v55 = vsel %vm41, %v28, 0
    %v58 = vsel %vm41, %v29, 0
    %v61 = vsel %vm41, %v30, 0
    %v64 = vsel %vm41, %v31, 0
    %v67 = vsel %vm41, %v32, 0
    %v70 = vsel %vm41, %v33, 0
    %v73 = vsel %vm41, %v34, 0
    %v76 = vsel %vm41, %v35, 0
    %v79 = vsel %vm41, %v36, 0
    %v82 = vsel %vm41, %v37, 0
    %v85 = vsel %vm41, %v38, 0
    %v88 = vsel %vm41, %v39, 0
    %v91 = vsel %vm41, %v40, 0
    %93 = vmatprep.subr.mxu0 0.0
    %94 = vmatpush1.xpose.msra.mxu0 %v46
    %95 = vmatprep.subr.mxu0 0.0
    %96 = vmatpush1.xpose.msra.mxu0 %v49
    %97 = vmatprep.subr.mxu0 0.0
    %98 = vmatpush1.xpose.msra.mxu0 %v52
    %99 = vmatprep.subr.mxu0 0.0
    %100 = vmatpush1.xpose.msra.mxu0 %v55
    %101 = vmatprep.subr.mxu0 0.0
    %102 = vmatpush1.xpose.msra.mxu0 %v58
    %103 = vmatprep.subr.mxu0 0.0
    %104 = vmatpush1.xpose.msra.mxu0 %v61
    %105 = vmatprep.subr.mxu0 0.0
    %106 = vmatpush1.xpose.msra.mxu0 %v64
    %107 = vmatprep.subr.mxu0 0.0
    %108 = vmatpush1.xpose.msra.mxu0 %v67
    %109 = vmatprep.subr.mxu0 0.0
    %110 = vmatpush1.xpose.msra.mxu0 %v70
    %111 = vmatprep.subr.mxu0 0.0
    %112 = vmatpush1.xpose.msra.mxu0 %v73
    %113 = vmatprep.subr.mxu0 0.0
    %114 = vmatpush1.xpose.msra.mxu0 %v76
    %115 = vmatprep.subr.mxu0 0.0
    %116 = vmatpush1.xpose.msra.mxu0 %v79
    %117 = vmatprep.subr.mxu0 0.0
    %118 = vmatpush1.xpose.msra.mxu0 %v82
    %119 = vmatprep.subr.mxu0 0.0
    %120 = vmatpush1.xpose.msra.mxu0 %v85
    %121 = vmatprep.subr.mxu0 0.0
    %122 = vmatpush1.xpose.msra.mxu0 %v88
    %123 = vmatprep.subr.mxu0 0.0
    %124 = vmatpush1.xpose.msra.mxu0 %v91
    %125 = vmatprep.subr.mxu0 0.0
    %126 = vmatpush1.xpose.msra.mxu0 0.0
    %127 = vmatprep.subr.mxu0 0.0
    %128 = vmatpush1.xpose.msra.mxu0 0.0
    %129 = vmatprep.subr.mxu0 0.0
    %130 = vmatpush1.xpose.msra.mxu0 0.0
    %131 = vmatprep.subr.mxu0 0.0
    %132 = vmatpush1.xpose.msra.mxu0 0.0
    %133 = vmatprep.subr.mxu0 0.0
    %134 = vmatpush1.xpose.msra.mxu0 0.0
    %135 = vmatprep.subr.mxu0 0.0
    %136 = vmatpush1.xpose.msra.mxu0 0.0
    %137 = vmatprep.subr.mxu0 0.0
    %138 = vmatpush1.xpose.msra.mxu0 0.0
    %139 = vmatprep.subr.mxu0 0.0
    %140 = vmatpush1.xpose.msra.mxu0 0.0
    %141 = vmatprep.subr.mxu0 0.0
    %142 = vmatpush1.xpose.msra.mxu0 0.0
    %143 = vmatprep.subr.mxu0 0.0
    %144 = vmatpush1.xpose.msra.mxu0 0.0
    %145 = vmatprep.subr.mxu0 0.0
    %146 = vmatpush1.xpose.msra.mxu0 0.0
    %147 = vmatprep.subr.mxu0 0.0
    %148 = vmatpush1.xpose.msra.mxu0 0.0
    %149 = vmatprep.subr.mxu0 0.0
    %150 = vmatpush1.xpose.msra.mxu0 0.0
    %151 = vmatprep.subr.mxu0 0.0
    %152 = vmatpush1.xpose.msra.mxu0 0.0
    %153 = vmatprep.subr.mxu0 0.0
    %154 = vmatpush1.xpose.msra.mxu0 0.0
    %155 = vmatprep.subr.mxu0 0.0
    %156 = vmatpush1.xpose.msra.mxu0 0.0
    %157 = vmatprep.mubr.f32.mxu0 0.0
    %158 = vmatmul.mubr.f32.gmra.mrb[0].mxu0 %v43
    %v159 = vpop.f32.mrb[0].mxu0
    %v160 = vadd.f32 0.0, %v159
    %v161 = vpop.f32.mrb[0].mxu0
    %162 = vdwg.mxu0
    %v163 = vmul.f32 %v160, 0.31498027
    %164 = vst [vmem:[#allocation2] sm:$0x1] %v163
    // Predicated region
    $region6: #{tpu_custom_call.1} parent=1 // pred_check
      _
    $region7: #{tpu_custom_call.1} parent=1 // pred_check_branch
      %166 = sbr.rel (0) target = $region9
    $region8: #{tpu_custom_call.1} parent=1 // pred_region
      %s168 = ssub.s32 16, 16
      %169 = vsyncadd [#allocation3], %s168
      %s171 = sshll.u32 [#allocation2], 4
      %s172 = int_to_ptr.vmem [resolvable:$true] %s171
      %174 = dma.vmem_to_hbm [thread:$0]  %s172, 16, %s1, [#allocation3]
    $region9: #{tpu_custom_call.1} parent=1 // pred_fallthru
      _
    // Predicated region
    $region10: #{tpu_custom_call.1} parent=1 // pred_check
      _
    $region11: #{tpu_custom_call.1} parent=1 // pred_check_branch
      %176 = sbr.rel (0) target = $region13
    $region12: #{tpu_custom_call.1} parent=1 // pred_region
      %177 = dma.done [#allocation3], 16
    $region13: #{tpu_custom_call.1} parent=1 // pred_fallthru
      _
    %178 = vsyncpa [#allocation3], 1

</llo_original>
